<compile_context>
chip_gen: v7x
topology: tpu7x:2x2x1
jax: 0.10.0
libtpu: 0.0.40
codegen_flags: <defaults>
</compile_context>

<pallas_src>
import jax
import jax.numpy as jnp
from jax.experimental import pallas as pl
from jax.experimental.pallas import tpu as pltpu


def head_hyp_kernel(x_ref, w_ref, b_ref, out_ref):
    # x_ref: (B, L, C) ; w_ref: (C, OUT) ; b_ref: (1, OUT) ; out_ref: (B, OUT)
    inv_l = 1.0 / x_ref.shape[1]                      # static seq length
    pooled = jnp.sum(x_ref[...], axis=1) * inv_l      # (B, C)  — XLU sublane reduce
    y = jnp.dot(pooled, w_ref[...], preferred_element_type=jnp.float32)  # MXU
    out_ref[...] = (y + b_ref[...]).astype(out_ref.dtype)


def head_hyp_forward(x_eeg, x_hyp, t, w, b):
    """x_hyp: (B, L, C) float32; w: (C, OUT) (= W_torch^T); b: (OUT,).

    Returns (y, y_detached) matching HeadHYP.forward.
    """
    del x_eeg, t  # unused by the reference forward
    B, L, C = x_hyp.shape
    OUT = w.shape[1]

    y = pl.pallas_call(
        head_hyp_kernel,
        out_shape=jax.ShapeDtypeStruct((B, OUT), x_hyp.dtype),
        in_specs=[
            pl.BlockSpec(memory_space=pltpu.MemorySpace.VMEM),
            pl.BlockSpec(memory_space=pltpu.MemorySpace.VMEM),
            pl.BlockSpec(memory_space=pltpu.MemorySpace.VMEM),
        ],
        out_specs=pl.BlockSpec(memory_space=pltpu.MemorySpace.VMEM),
    )(x_hyp, w, b.reshape(1, OUT))

    # The "detached clone" is purely semantic — no need to write it in-kernel.
    return y, jax.lax.stop_gradient(y)


if __name__ == "__main__":
    key = jax.random.PRNGKey(0)
    k_eeg, k_hyp, k_w, k_b = jax.random.split(key, 4)

    B, L, C = 2, 8, 10      # x_hyp: (batch, seq, 10)
    OUT_CHANS = 32          # cfg.SWIN.OUT_CHANS

    x_eeg = jax.random.normal(k_eeg, (B, 16, OUT_CHANS), dtype=jnp.float32)  # unused pass-through
    x_hyp = jax.random.normal(k_hyp, (B, L, C), dtype=jnp.float32)
    t = jnp.arange(B, dtype=jnp.int32)

    # Deterministic Linear(10, OUT_CHANS) params: W stored as (in, out) = W_torch^T
    bound = 1.0 / jnp.sqrt(C)
    w = jax.random.uniform(k_w, (C, OUT_CHANS), minval=-bound, maxval=bound,
                           dtype=jnp.float32)
    b = jax.random.uniform(k_b, (OUT_CHANS,), minval=-bound, maxval=bound,
                           dtype=jnp.float32)

    y, y_copy = head_hyp_forward(x_eeg, x_hyp, t, w, b)
    jax.block_until_ready((y, y_copy))

    # Reference check in plain JAX (original mean -> matmul -> bias order).
    ref = jnp.mean(x_hyp, axis=1) @ w + b
    assert y.shape == (B, OUT_CHANS) and y_copy.shape == (B, OUT_CHANS)
    assert jnp.allclose(y, ref, atol=1e-5, rtol=1e-5)
    assert jnp.allclose(y_copy, ref, atol=1e-5, rtol=1e-5)

    print("KERNEL_OK")
</pallas_src>

<mosaic_0001>
module attributes {stable_mosaic.version = 11 : i64} {
  func.func @head_hyp_kernel(%arg0: memref<2x8x10xf32, #tpu.memory_space<vmem>>, %arg1: memref<10x32xf32, #tpu.memory_space<vmem>>, %arg2: memref<1x32xf32, #tpu.memory_space<vmem>>, %arg3: memref<2x32xf32, #tpu.memory_space<vmem>>) attributes {dimension_semantics = [], scalar_prefetch = 0 : i64, scratch_operands = 0 : i64, tpu.core_type = #tpu.core_type<tc>} {
    %c0 = arith.constant 0 : index
    %c0_0 = arith.constant 0 : index
    %c0_1 = arith.constant 0 : index
    %0 = vector.load %arg0[%c0, %c0_0, %c0_1] : memref<2x8x10xf32, #tpu.memory_space<vmem>>, vector<2x8x10xf32>
    %cst = arith.constant dense<0.000000e+00> : vector<2x10xf32>
    %1 = vector.multi_reduction <add>, %0, %cst [1] : vector<2x8x10xf32> to vector<2x10xf32>
    %cst_2 = arith.constant 1.250000e-01 : f32
    %2 = vector.broadcast %cst_2 : f32 to vector<2x10xf32>
    %3 = arith.mulf %1, %2 : vector<2x10xf32>
    %c0_3 = arith.constant 0 : index
    %c0_4 = arith.constant 0 : index
    %4 = vector.load %arg1[%c0_3, %c0_4] : memref<10x32xf32, #tpu.memory_space<vmem>>, vector<10x32xf32>
    %cst_5 = arith.constant dense<0.000000e+00> : vector<2x32xf32>
    %5 = tpu.matmul %3, %4, %cst_5 {dimension_numbers = #tpu.dot_dimension_numbers<[1], [0], [0], [1], [0, 0, 1, 1], [], []>} : vector<2x10xf32>, vector<10x32xf32>, vector<2x32xf32> -> vector<2x32xf32>
    %c0_6 = arith.constant 0 : index
    %c0_7 = arith.constant 0 : index
    %6 = vector.load %arg2[%c0_6, %c0_7] : memref<1x32xf32, #tpu.memory_space<vmem>>, vector<1x32xf32>
    %7 = vector.broadcast %6 : vector<1x32xf32> to vector<2x32xf32>
    %8 = arith.addf %5, %7 : vector<2x32xf32>
    %c0_8 = arith.constant 0 : index
    %c0_9 = arith.constant 0 : index
    %9 = vector.load %arg3[%c0_8, %c0_9] : memref<2x32xf32, #tpu.memory_space<vmem>>, vector<2x32xf32>
    tpu.vector_store %arg3[%c0_8, %c0_9], %8 {strides = array<i32>} : memref<2x32xf32, #tpu.memory_space<vmem>>, vector<2x32xf32>,
    return
  }
}

</mosaic_0001>

<llo_original>
// kernel: tpu_custom_call.1
$region0: #{tpu_custom_call.1}
  #allocation0 [shape = 'u32[]', space=smem, size = 0x4, offset = 0x4, fixed_abs, tag = 'smem constant byte address 0x4 - core index']
  #allocation1 [shape = 'u32[144,128]{1,0:T(1,128)}', space=vmem, size = 0x12000, scoped, tag = 'internal scratch']
  %s0 = inlined_call_operand.hbm [shape: f32[2,8,10], index: 0, kind: input, shape index: {}]
  %s1 = inlined_call_operand.hbm [shape: f32[10,32], index: 1, kind: input, shape index: {}]
  %s2 = inlined_call_operand.vmem [shape: f32[1,32], index: 2, kind: input, shape index: {}]
  %s3 = inlined_call_operand.hbm [shape: f32[2,32], index: 3, kind: output, shape index: {}]
  %s4 = sld [smem:[#allocation0]]
  $region30: #{tpu_custom_call.1} parent=0
    _
  %s6 = ssub.s32 1, %s4
  %s7 = scalar_select 0, %s6, %s4
  $region1: #{tpu_custom_call.1} parent=0
    #allocation2 [shape = 'u8[8192]{0}', space=vmem, size = 0x2000, scoped, tag = 'input window, operand 0, single buffered']
    #allocation3 [shape = 's32[1]{0}', space=sflag, size = 0x4, scoped, tag = 'scoped memory for tpu_custom_call.1']
    #allocation4 [shape = 's32[1]{0}', space=sflag, size = 0x4, scoped, tag = 'scoped memory for tpu_custom_call.1']
    #allocation5 [shape = 'u8[8192]{0}', space=vmem, size = 0x2000, scoped, tag = 'input window, operand 1, single buffered']
    #allocation6 [shape = 's32[1]{0}', space=sflag, size = 0x4, scoped, tag = 'scoped memory for tpu_custom_call.1']
    #allocation7 [shape = 'u8[1024]{0}', space=vmem, size = 0x400, scoped, tag = 'output window, operand 0, single buffered']
    %8 = vsyncpa [#allocation3], 0
    %9 = vsyncpa [#allocation6], 0
    %10 = vsyncpa [#allocation4], 0
    // Predicated region
    $region2: #{tpu_custom_call.1} parent=1 // pred_check
      _
    $region3: #{tpu_custom_call.1} parent=1 // pred_check_branch
      %12 = sbr.rel (0) target = $region5
    $region4: #{tpu_custom_call.1} parent=1 // pred_region
      %s14 = ssub.s32 256, 256
      %15 = vsyncadd [#allocation3], %s14
      %s16 = sshll.u32 [#allocation2], 4
      %s17 = int_to_ptr.vmem [resolvable:$true] %s16
      %22 = dma.hbm_to_vmem [thread:$0]  %s0, 256, %s17, [#allocation3], 128, 128, 8
    $region5: #{tpu_custom_call.1} parent=1 // pred_fallthru
      _
    // Predicated region
    $region6: #{tpu_custom_call.1} parent=1 // pred_check
      _
    $region7: #{tpu_custom_call.1} parent=1 // pred_check_branch
      %24 = sbr.rel (0) target = $region9
    $region8: #{tpu_custom_call.1} parent=1 // pred_region
      %s26 = ssub.s32 256, 256
      %27 = vsyncadd [#allocation6], %s26
      %s28 = sshll.u32 [#allocation5], 4
      %s29 = int_to_ptr.vmem [resolvable:$true] %s28
      %34 = dma.hbm_to_vmem [thread:$0]  %s1, 256, %s29, [#allocation6], 128, 128, 8
    $region9: #{tpu_custom_call.1} parent=1 // pred_fallthru
      _
    // Predicated region
    $region10: #{tpu_custom_call.1} parent=1 // pred_check
      _
    $region11: #{tpu_custom_call.1} parent=1 // pred_check_branch
      %36 = sbr.rel (0) target = $region13
    $region12: #{tpu_custom_call.1} parent=1 // pred_region
      _
    $region13: #{tpu_custom_call.1} parent=1 // pred_fallthru
      _
    // Predicated region
    $region14: #{tpu_custom_call.1} parent=1 // pred_check
      _
    $region15: #{tpu_custom_call.1} parent=1 // pred_check_branch
      %38 = sbr.rel (0) target = $region17
    $region16: #{tpu_custom_call.1} parent=1 // pred_region
      %39 = dma.done [#allocation3], 256
    $region17: #{tpu_custom_call.1} parent=1 // pred_fallthru
      _
    // Predicated region
    $region18: #{tpu_custom_call.1} parent=1 // pred_check
      _
    $region19: #{tpu_custom_call.1} parent=1 // pred_check_branch
      %41 = sbr.rel (0) target = $region21
    $region20: #{tpu_custom_call.1} parent=1 // pred_region
      %42 = dma.done [#allocation6], 256
    $region21: #{tpu_custom_call.1} parent=1 // pred_fallthru
      _
    %v43 = vld [vmem:[#allocation2] sm:$0xff]
    %v44 = vld [vmem:[#allocation2 + $0x8] sm:$0xff]
    %vm45 = vcmask 80896
    %v46 = vsel %vm45, %v43, 0.0
    %v47 = vrot.slane %v46, 4
    %v48 = vadd.f32 %v46, %v47
    %v49 = vrot.slane %v48, 2
    %v50 = vadd.f32 %v48, %v49
    %v51 = vrot.slane %v50, 1
    %v52 = vadd.f32 %v50, %v51
    %v53 = vsel %vm45, %v44, 0.0
    %v54 = vrot.slane %v53, 4
    %v55 = vadd.f32 %v53, %v54
    %v56 = vrot.slane %v55, 2
    %v57 = vadd.f32 %v55, %v56
    %v58 = vrot.slane %v57, 1
    %v59 = vadd.f32 %v57, %v58
    %v60 = vmul.f32 %v52, 0.125
    %v61 = vmul.f32 %v59, 0.125
    %v62 = vld [vmem:[#allocation5] sm:$0xff]
    %v63 = vld [vmem:[#allocation5 + $0x8] sm:$0x3]
    %v64 = vld [vmem:[%s2] sm:$0x1]
    %v66 = vlaneseq
    %v67 = vshrl.u32 %v66, 7
    %v68 = vsub.s32 0, %v67
    %v69 = vrot.slane %v64, %v68
    %vm73 = vcmask 1041409
    %v74 = vsel %vm73, %v61, %v60
    %v75 = vsel %vm45, %v74, 0
    %vm77 = vcmask 1041408
    %v79 = vsel %vm77, %v63, 0
    %81 = vmatprep.subr.mxu0 0.0
    %82 = vmatpush1.msra.mxu0 %v62
    %83 = vmatprep.subr.mxu0 0.0
    %84 = vmatpush1.msra.mxu0 %v79
    %85 = vmatprep.subr.mxu0 0.0
    %86 = vmatpush1.msra.mxu0 0.0
    %87 = vmatprep.subr.mxu0 0.0
    %88 = vmatpush1.msra.mxu0 0.0
    %89 = vmatprep.subr.mxu0 0.0
    %90 = vmatpush1.msra.mxu0 0.0
    %91 = vmatprep.subr.mxu0 0.0
    %92 = vmatpush1.msra.mxu0 0.0
    %93 = vmatprep.subr.mxu0 0.0
    %94 = vmatpush1.msra.mxu0 0.0
    %95 = vmatprep.subr.mxu0 0.0
    %96 = vmatpush1.msra.mxu0 0.0
    %97 = vmatprep.subr.mxu0 0.0
    %98 = vmatpush1.msra.mxu0 0.0
    %99 = vmatprep.subr.mxu0 0.0
    %100 = vmatpush1.msra.mxu0 0.0
    %101 = vmatprep.subr.mxu0 0.0
    %102 = vmatpush1.msra.mxu0 0.0
    %103 = vmatprep.subr.mxu0 0.0
    %104 = vmatpush1.msra.mxu0 0.0
    %105 = vmatprep.subr.mxu0 0.0
    %106 = vmatpush1.msra.mxu0 0.0
    %107 = vmatprep.subr.mxu0 0.0
    %108 = vmatpush1.msra.mxu0 0.0
    %109 = vmatprep.subr.mxu0 0.0
    %110 = vmatpush1.msra.mxu0 0.0
    %111 = vmatprep.subr.mxu0 0.0
    %112 = vmatpush1.msra.mxu0 0.0
    %113 = vmatprep.subr.mxu0 0.0
    %114 = vmatpush1.msra.mxu0 0.0
    %115 = vmatprep.subr.mxu0 0.0
    %116 = vmatpush1.msra.mxu0 0.0
    %117 = vmatprep.subr.mxu0 0.0
    %118 = vmatpush1.msra.mxu0 0.0
    %119 = vmatprep.subr.mxu0 0.0
    %120 = vmatpush1.msra.mxu0 0.0
    %121 = vmatprep.subr.mxu0 0.0
    %122 = vmatpush1.msra.mxu0 0.0
    %123 = vmatprep.subr.mxu0 0.0
    %124 = vmatpush1.msra.mxu0 0.0
    %125 = vmatprep.subr.mxu0 0.0
    %126 = vmatpush1.msra.mxu0 0.0
    %127 = vmatprep.subr.mxu0 0.0
    %128 = vmatpush1.msra.mxu0 0.0
    %129 = vmatprep.subr.mxu0 0.0
    %130 = vmatpush1.msra.mxu0 0.0
    %131 = vmatprep.subr.mxu0 0.0
    %132 = vmatpush1.msra.mxu0 0.0
    %133 = vmatprep.subr.mxu0 0.0
    %134 = vmatpush1.msra.mxu0 0.0
    %135 = vmatprep.subr.mxu0 0.0
    %136 = vmatpush1.msra.mxu0 0.0
    %137 = vmatprep.subr.mxu0 0.0
    %138 = vmatpush1.msra.mxu0 0.0
    %139 = vmatprep.subr.mxu0 0.0
    %140 = vmatpush1.msra.mxu0 0.0
    %141 = vmatprep.subr.mxu0 0.0
    %142 = vmatpush1.msra.mxu0 0.0
    %143 = vmatprep.subr.mxu0 0.0
    %144 = vmatpush1.msra.mxu0 0.0
    %145 = vmatprep.mubr.f32.mxu0 0.0
    %146 = vmatmul.mubr.f32.gmra.mrb[0].mxu0 %v75
    %v147 = vpop.f32.mrb[0].mxu0
    %v148 = vadd.f32 %v69, %v147
    %v149 = vpop.f32.mrb[0].mxu0
    %150 = vdwg.mxu0
    %vm151 = vcmask 254976
    %152 = vst.msk [vmem:[#allocation7] sm:$0x3] %vm151, %v148
    // Predicated region
    $region22: #{tpu_custom_call.1} parent=1 // pred_check
      _
    $region23: #{tpu_custom_call.1} parent=1 // pred_check_branch
      %154 = sbr.rel (0) target = $region25
    $region24: #{tpu_custom_call.1} parent=1 // pred_region
      %s156 = ssub.s32 32, 32
      %157 = vsyncadd [#allocation4], %s156
      %s159 = sshll.u32 [#allocation7], 4
      %s160 = int_to_ptr.vmem [resolvable:$true] %s159
      %162 = dma.vmem_to_hbm [thread:$0]  %s160, 32, %s3, [#allocation4]
    $region25: #{tpu_custom_call.1} parent=1 // pred_fallthru
      _
    // Predicated region
    $region26: #{tpu_custom_call.1} parent=1 // pred_check
      _
    $region27: #{tpu_custom_call.1} parent=1 // pred_check_branch
      %164 = sbr.rel (0) target = $region29
    $region28: #{tpu_custom_call.1} parent=1 // pred_region
      %165 = dma.done [#allocation4], 32
    $region29: #{tpu_custom_call.1} parent=1 // pred_fallthru
      _
    %166 = vsyncpa [#allocation3], 1
    %167 = vsyncpa [#allocation6], 1
    %168 = vsyncpa [#allocation4], 1

</llo_original>
